<compile_context>
chip_gen: v7x
topology: tpu7x:2x2x1
jax: 0.10.0
libtpu: 0.0.40
codegen_flags: <defaults>
</compile_context>

<pallas_src>
import jax
import jax.numpy as jnp
from jax.experimental import pallas as pl
from jax.experimental.pallas import tpu as pltpu


def _round_up(x, m):
    return (x + m - 1) // m * m


def _scatter_to_dense(idx_ref, vals_ref, in_dim):
    """Unrolled VPU select-accumulate scatter: [TB, A_in] sparse -> [TB, in_dim]."""
    tb, a_in = idx_ref.shape
    col = jax.lax.broadcasted_iota(jnp.int32, (tb, in_dim), 1)
    x = jnp.zeros((tb, in_dim), jnp.float32)
    for k in range(a_in):  # A_in is small; static unroll
        x = x + jnp.where(col == idx_ref[:, k:k + 1], vals_ref[:, k:k + 1], 0.0)
    return x


def _dense_out_kernel(idx_ref, vals_ref, w_ref, b_ref, out_ref, x_ref):
    # idx_ref : [TB, A_in] int32, vals_ref: [TB, A_in] f32
    # w_ref   : [TN, in_dim] f32 (torch layout tile), b_ref: [1, TN] f32
    # out_ref : [TB, TN] f32, x_ref: [TB, in_dim] f32 scratch
    nt = pl.program_id(1)
    in_dim = x_ref.shape[1]

    @pl.when(nt == 0)
    def _():
        x_ref[...] = _scatter_to_dense(idx_ref, vals_ref, in_dim)

    out = jax.lax.dot_general(
        x_ref[...], w_ref[...],
        dimension_numbers=(((1,), (1,)), ((), ())),
        preferred_element_type=jnp.float32)
    out_ref[...] = (out + b_ref[...]).astype(out_ref.dtype)


def _sparse_out_kernel(idx_ref, vals_ref, oidx_ref, w_ref, b_ref, out_ref, x_ref):
    # oidx_ref: [TB, A_out] int32; out_ref: [TB, A_out_pad] f32 (grid-resident acc)
    nt = pl.program_id(1)
    tb, a_out = oidx_ref.shape
    tn, in_dim = w_ref.shape
    a_out_pad = out_ref.shape[1]

    @pl.when(nt == 0)
    def _():
        x_ref[...] = _scatter_to_dense(idx_ref, vals_ref, in_dim)
        out_ref[...] = jnp.zeros_like(out_ref)

    partial = jax.lax.dot_general(
        x_ref[...], w_ref[...],
        dimension_numbers=(((1,), (1,)), ((), ())),
        preferred_element_type=jnp.float32) + b_ref[...]          # [TB, TN]

    # Gather active output columns of this TN slice via masked lane reductions
    # (XLU), accumulated across the N grid axis into the resident output block.
    col_ids = nt * tn + jax.lax.broadcasted_iota(jnp.int32, (tb, tn), 1)
    out_col = jax.lax.broadcasted_iota(jnp.int32, (tb, a_out_pad), 1)
    acc = jnp.zeros((tb, a_out_pad), jnp.float32)
    for j in range(a_out):  # A_out is small; static unroll
        hit = col_ids == oidx_ref[:, j:j + 1]                      # [TB, TN]
        colv = jnp.sum(jnp.where(hit, partial, 0.0), axis=1, keepdims=True)
        acc = acc + jnp.where(out_col == j, colv, 0.0)
    out_ref[...] = out_ref[...] + acc


def slide_layer_forward(in_values, weight, bias, active_in_indices,
                        active_out_indices=None):
    """Forward pass of slideLayer's sparse multiplier.

    in_values:           [B, A_in] f32   (values at the active input features)
    weight:              [out_dim, in_dim] f32 (torch nn.Linear layout, NOT transposed)
    bias:                [out_dim] f32
    active_in_indices:   [B, A_in] int
    active_out_indices:  [B, A_out] int or None
    """
    B, a_in = in_values.shape
    out_dim, in_dim = weight.shape

    # --- tiling / padding --------------------------------------------------
    tb = min(128, _round_up(B, 8))          # batch tile (sublane aligned)
    b_pad = _round_up(B, tb)
    od128 = _round_up(out_dim, 128)         # lane-dense output
    if od128 <= 512:
        tn, out_pad = od128, od128
    else:
        tn, out_pad = 512, _round_up(od128, 512)
    n_bt, n_nt = b_pad // tb, out_pad // tn

    w = jnp.asarray(weight, jnp.float32)
    b1 = jnp.asarray(bias, jnp.float32)
    if out_pad != out_dim:
        w = jnp.pad(w, ((0, out_pad - out_dim), (0, 0)))
        b1 = jnp.pad(b1, (0, out_pad - out_dim))
    b2 = b1.reshape(1, out_pad)

    vals = jnp.asarray(in_values, jnp.float32)
    idx = jnp.asarray(active_in_indices, jnp.int32)
    if b_pad != B:
        vals = jnp.pad(vals, ((0, b_pad - B), (0, 0)))
        idx = jnp.pad(idx, ((0, b_pad - B), (0, 0)))

    cost = pl.CostEstimate(
        flops=2 * b_pad * in_dim * out_pad,
        transcendentals=0,
        bytes_accessed=4 * (out_pad * in_dim + out_pad
                            + b_pad * (2 * a_in + out_pad)))

    common_in_specs = [
        pl.BlockSpec((tb, a_in), lambda bt, nt: (bt, 0)),      # active_in_indices
        pl.BlockSpec((tb, a_in), lambda bt, nt: (bt, 0)),      # in_values
    ]
    w_spec = pl.BlockSpec((tn, in_dim), lambda bt, nt: (nt, 0))
    b_spec = pl.BlockSpec((1, tn), lambda bt, nt: (0, nt))

    if active_out_indices is None:
        out = pl.pallas_call(
            _dense_out_kernel,
            out_shape=jax.ShapeDtypeStruct((b_pad, out_pad), jnp.float32),
            grid_spec=pltpu.PrefetchScalarGridSpec(
                num_scalar_prefetch=0,
                grid=(n_bt, n_nt),
                in_specs=common_in_specs + [w_spec, b_spec],
                out_specs=pl.BlockSpec((tb, tn), lambda bt, nt: (bt, nt)),
                scratch_shapes=[pltpu.VMEM((tb, in_dim), jnp.float32)],
            ),
            compiler_params=pltpu.CompilerParams(
                dimension_semantics=("parallel", "arbitrary")),
            cost_estimate=cost,
        )(idx, vals, w, b2)
        return out[:B, :out_dim], None

    a_out = active_out_indices.shape[1]
    a_out_pad = _round_up(a_out, 128)       # lane-dense output block
    oidx = jnp.asarray(active_out_indices, jnp.int32)
    if b_pad != B:
        oidx = jnp.pad(oidx, ((0, b_pad - B), (0, 0)))

    out = pl.pallas_call(
        _sparse_out_kernel,
        out_shape=jax.ShapeDtypeStruct((b_pad, a_out_pad), jnp.float32),
        grid_spec=pltpu.PrefetchScalarGridSpec(
            num_scalar_prefetch=0,
            grid=(n_bt, n_nt),
            in_specs=common_in_specs + [
                pl.BlockSpec((tb, a_out), lambda bt, nt: (bt, 0)),   # active_out_indices
                w_spec, b_spec],
            # same block for every nt -> grid-resident accumulator across N
            out_specs=pl.BlockSpec((tb, a_out_pad), lambda bt, nt: (bt, 0)),
            scratch_shapes=[pltpu.VMEM((tb, in_dim), jnp.float32)],
        ),
        compiler_params=pltpu.CompilerParams(
            dimension_semantics=("parallel", "arbitrary")),
        cost_estimate=cost,
    )(idx, vals, oidx, w, b2)
    return out[:B, :a_out], active_out_indices


def _reference(in_values, weight, bias, active_in_indices, active_out_indices=None):
    B, a_in = in_values.shape
    out_dim, in_dim = weight.shape
    x_dense = jnp.zeros((B, in_dim), jnp.float32)
    x_dense = x_dense.at[jnp.arange(B)[:, None], active_in_indices].add(in_values)
    full = x_dense @ weight.T + bias[None, :]
    if active_out_indices is None:
        return full
    return jnp.take_along_axis(full, active_out_indices, axis=1)


if __name__ == "__main__":
    B, in_dim, out_dim = 2, 32, 64
    a_in, a_out = 8, 16

    key = jax.random.PRNGKey(0)
    kw, kb, kx, ki, ko = jax.random.split(key, 5)

    # deterministic nn.Linear-style init: U(-1/sqrt(in_dim), 1/sqrt(in_dim))
    bound = 1.0 / (in_dim ** 0.5)
    weight = jax.random.uniform(kw, (out_dim, in_dim), jnp.float32, -bound, bound)
    bias = jax.random.uniform(kb, (out_dim,), jnp.float32, -bound, bound)

    in_values = jax.random.normal(kx, (B, a_in), jnp.float32)
    active_in_indices = jnp.stack(
        [jax.random.permutation(jax.random.fold_in(ki, b), in_dim)[:a_in]
         for b in range(B)]).astype(jnp.int32)
    active_out_indices = jnp.stack(
        [jax.random.permutation(jax.random.fold_in(ko, b), out_dim)[:a_out]
         for b in range(B)]).astype(jnp.int32)

    # Path 1: active_out_indices is None -> dense output over all out_dim nodes.
    out_dense, none_idx = slide_layer_forward(
        in_values, weight, bias, active_in_indices, None)
    out_dense = jax.block_until_ready(out_dense)
    ref_dense = _reference(in_values, weight, bias, active_in_indices, None)
    assert none_idx is None
    assert out_dense.shape == (B, out_dim)
    assert jnp.allclose(out_dense, ref_dense, atol=1e-5, rtol=1e-5)

    # Path 2: active_out_indices given (LSH sampling itself not translated).
    out_sparse, ret_idx = slide_layer_forward(
        in_values, weight, bias, active_in_indices, active_out_indices)
    out_sparse = jax.block_until_ready(out_sparse)
    ref_sparse = _reference(in_values, weight, bias, active_in_indices,
                            active_out_indices)
    assert out_sparse.shape == (B, a_out)
    assert jnp.allclose(out_sparse, ref_sparse, atol=1e-5, rtol=1e-5)
    assert jnp.array_equal(ret_idx, active_out_indices)

    print("KERNEL_OK")
</pallas_src>

<mosaic_0001>
module attributes {stable_mosaic.version = 11 : i64} {
  func.func @_dense_out_kernel(%arg0: i32, %arg1: i32, %arg2: memref<8x8xi32, #tpu.memory_space<vmem>>, %arg3: memref<8x8xf32, #tpu.memory_space<vmem>>, %arg4: memref<128x32xf32, #tpu.memory_space<vmem>>, %arg5: memref<1x128xf32, #tpu.memory_space<vmem>>, %arg6: memref<8x128xf32, #tpu.memory_space<vmem>>, %arg7: memref<8x32xf32, #tpu.memory_space<vmem>>) attributes {dimension_semantics = [#tpu.dimension_semantics<parallel>, #tpu.dimension_semantics<arbitrary>], iteration_bounds = array<i64: 1, 1>, scalar_prefetch = 0 : i64, scratch_operands = 1 : i64, tpu.core_type = #tpu.core_type<tc>, window_params = [{transform_indices = @transform_0, window_bounds = array<i64: 8, 8>}, {transform_indices = @transform_1, window_bounds = array<i64: 8, 8>}, {transform_indices = @transform_2, window_bounds = array<i64: 128, 32>}, {transform_indices = @transform_3, window_bounds = array<i64: 1, 128>}, {transform_indices = @transform_4, window_bounds = array<i64: 8, 128>}]} {
    %c0_i32 = arith.constant 0 : i32
    %0 = arith.cmpi eq, %arg1, %c0_i32 : i32
    %1 = arith.extui %0 : i1 to i32
    %c0_i32_0 = arith.constant 0 : i32
    %2 = arith.cmpi ne, %1, %c0_i32_0 : i32
    scf.if %2 {
      %10 = tpu.iota {dimensions = array<i32: 1>} : vector<8x32xi32>
      %cst_8 = arith.constant 0.000000e+00 : f32
      %11 = vector.broadcast %cst_8 : f32 to vector<8x32xf32>
      %c0_9 = arith.constant 0 : index
      %c0_10 = arith.constant 0 : index
      %12 = vector.load %arg2[%c0_9, %c0_10] : memref<8x8xi32, #tpu.memory_space<vmem>>, vector<8x1xi32>
      %13 = vector.broadcast %12 : vector<8x1xi32> to vector<8x32xi32>
      %14 = arith.cmpi eq, %10, %13 : vector<8x32xi32>
      %c0_11 = arith.constant 0 : index
      %c0_12 = arith.constant 0 : index
      %15 = vector.load %arg3[%c0_11, %c0_12] : memref<8x8xf32, #tpu.memory_space<vmem>>, vector<8x1xf32>
      %cst_13 = arith.constant 0.000000e+00 : f32
      %16 = vector.shape_cast %15 : vector<8x1xf32> to vector<8x1xf32>
      %17 = vector.broadcast %16 : vector<8x1xf32> to vector<8x32xf32>
      %18 = vector.broadcast %cst_13 : f32 to vector<8x32xf32>
      %19 = arith.select %14, %17, %18 : vector<8x32xi1>, vector<8x32xf32>
      %20 = arith.addf %11, %19 : vector<8x32xf32>
      %c0_14 = arith.constant 0 : index
      %c1 = arith.constant 1 : index
      %21 = vector.load %arg2[%c0_14, %c1] : memref<8x8xi32, #tpu.memory_space<vmem>>, vector<8x1xi32>
      %22 = vector.broadcast %21 : vector<8x1xi32> to vector<8x32xi32>
      %23 = arith.cmpi eq, %10, %22 : vector<8x32xi32>
      %c0_15 = arith.constant 0 : index
      %c1_16 = arith.constant 1 : index
      %24 = vector.load %arg3[%c0_15, %c1_16] : memref<8x8xf32, #tpu.memory_space<vmem>>, vector<8x1xf32>
      %cst_17 = arith.constant 0.000000e+00 : f32
      %25 = vector.shape_cast %24 : vector<8x1xf32> to vector<8x1xf32>
      %26 = vector.broadcast %25 : vector<8x1xf32> to vector<8x32xf32>
      %27 = vector.broadcast %cst_17 : f32 to vector<8x32xf32>
      %28 = arith.select %23, %26, %27 : vector<8x32xi1>, vector<8x32xf32>
      %29 = arith.addf %20, %28 : vector<8x32xf32>
      %c0_18 = arith.constant 0 : index
      %c2 = arith.constant 2 : index
      %30 = vector.load %arg2[%c0_18, %c2] : memref<8x8xi32, #tpu.memory_space<vmem>>, vector<8x1xi32>
      %31 = vector.broadcast %30 : vector<8x1xi32> to vector<8x32xi32>
      %32 = arith.cmpi eq, %10, %31 : vector<8x32xi32>
      %c0_19 = arith.constant 0 : index
      %c2_20 = arith.constant 2 : index
      %33 = vector.load %arg3[%c0_19, %c2_20] : memref<8x8xf32, #tpu.memory_space<vmem>>, vector<8x1xf32>
      %cst_21 = arith.constant 0.000000e+00 : f32
      %34 = vector.shape_cast %33 : vector<8x1xf32> to vector<8x1xf32>
      %35 = vector.broadcast %34 : vector<8x1xf32> to vector<8x32xf32>
      %36 = vector.broadcast %cst_21 : f32 to vector<8x32xf32>
      %37 = arith.select %32, %35, %36 : vector<8x32xi1>, vector<8x32xf32>
      %38 = arith.addf %29, %37 : vector<8x32xf32>
      %c0_22 = arith.constant 0 : index
      %c3 = arith.constant 3 : index
      %39 = vector.load %arg2[%c0_22, %c3] : memref<8x8xi32, #tpu.memory_space<vmem>>, vector<8x1xi32>
      %40 = vector.broadcast %39 : vector<8x1xi32> to vector<8x32xi32>
      %41 = arith.cmpi eq, %10, %40 : vector<8x32xi32>
      %c0_23 = arith.constant 0 : index
      %c3_24 = arith.constant 3 : index
      %42 = vector.load %arg3[%c0_23, %c3_24] : memref<8x8xf32, #tpu.memory_space<vmem>>, vector<8x1xf32>
      %cst_25 = arith.constant 0.000000e+00 : f32
      %43 = vector.shape_cast %42 : vector<8x1xf32> to vector<8x1xf32>
      %44 = vector.broadcast %43 : vector<8x1xf32> to vector<8x32xf32>
      %45 = vector.broadcast %cst_25 : f32 to vector<8x32xf32>
      %46 = arith.select %41, %44, %45 : vector<8x32xi1>, vector<8x32xf32>
      %47 = arith.addf %38, %46 : vector<8x32xf32>
      %c0_26 = arith.constant 0 : index
      %c4 = arith.constant 4 : index
      %48 = vector.load %arg2[%c0_26, %c4] : memref<8x8xi32, #tpu.memory_space<vmem>>, vector<8x1xi32>
      %49 = vector.broadcast %48 : vector<8x1xi32> to vector<8x32xi32>
      %50 = arith.cmpi eq, %10, %49 : vector<8x32xi32>
      %c0_27 = arith.constant 0 : index
      %c4_28 = arith.constant 4 : index
      %51 = vector.load %arg3[%c0_27, %c4_28] : memref<8x8xf32, #tpu.memory_space<vmem>>, vector<8x1xf32>
      %cst_29 = arith.constant 0.000000e+00 : f32
      %52 = vector.shape_cast %51 : vector<8x1xf32> to vector<8x1xf32>
      %53 = vector.broadcast %52 : vector<8x1xf32> to vector<8x32xf32>
      %54 = vector.broadcast %cst_29 : f32 to vector<8x32xf32>
      %55 = arith.select %50, %53, %54 : vector<8x32xi1>, vector<8x32xf32>
      %56 = arith.addf %47, %55 : vector<8x32xf32>
      %c0_30 = arith.constant 0 : index
      %c5 = arith.constant 5 : index
      %57 = vector.load %arg2[%c0_30, %c5] : memref<8x8xi32, #tpu.memory_space<vmem>>, vector<8x1xi32>
      %58 = vector.broadcast %57 : vector<8x1xi32> to vector<8x32xi32>
      %59 = arith.cmpi eq, %10, %58 : vector<8x32xi32>
      %c0_31 = arith.constant 0 : index
      %c5_32 = arith.constant 5 : index
      %60 = vector.load %arg3[%c0_31, %c5_32] : memref<8x8xf32, #tpu.memory_space<vmem>>, vector<8x1xf32>
      %cst_33 = arith.constant 0.000000e+00 : f32
      %61 = vector.shape_cast %60 : vector<8x1xf32> to vector<8x1xf32>
      %62 = vector.broadcast %61 : vector<8x1xf32> to vector<8x32xf32>
      %63 = vector.broadcast %cst_33 : f32 to vector<8x32xf32>
      %64 = arith.select %59, %62, %63 : vector<8x32xi1>, vector<8x32xf32>
      %65 = arith.addf %56, %64 : vector<8x32xf32>
      %c0_34 = arith.constant 0 : index
      %c6 = arith.constant 6 : index
      %66 = vector.load %arg2[%c0_34, %c6] : memref<8x8xi32, #tpu.memory_space<vmem>>, vector<8x1xi32>
      %67 = vector.broadcast %66 : vector<8x1xi32> to vector<8x32xi32>
      %68 = arith.cmpi eq, %10, %67 : vector<8x32xi32>
      %c0_35 = arith.constant 0 : index
      %c6_36 = arith.constant 6 : index
      %69 = vector.load %arg3[%c0_35, %c6_36] : memref<8x8xf32, #tpu.memory_space<vmem>>, vector<8x1xf32>
      %cst_37 = arith.constant 0.000000e+00 : f32
      %70 = vector.shape_cast %69 : vector<8x1xf32> to vector<8x1xf32>
      %71 = vector.broadcast %70 : vector<8x1xf32> to vector<8x32xf32>
      %72 = vector.broadcast %cst_37 : f32 to vector<8x32xf32>
      %73 = arith.select %68, %71, %72 : vector<8x32xi1>, vector<8x32xf32>
      %74 = arith.addf %65, %73 : vector<8x32xf32>
      %c0_38 = arith.constant 0 : index
      %c7 = arith.constant 7 : index
      %75 = vector.load %arg2[%c0_38, %c7] : memref<8x8xi32, #tpu.memory_space<vmem>>, vector<8x1xi32>
      %76 = vector.broadcast %75 : vector<8x1xi32> to vector<8x32xi32>
      %77 = arith.cmpi eq, %10, %76 : vector<8x32xi32>
      %c0_39 = arith.constant 0 : index
      %c7_40 = arith.constant 7 : index
      %78 = vector.load %arg3[%c0_39, %c7_40] : memref<8x8xf32, #tpu.memory_space<vmem>>, vector<8x1xf32>
      %cst_41 = arith.constant 0.000000e+00 : f32
      %79 = vector.shape_cast %78 : vector<8x1xf32> to vector<8x1xf32>
      %80 = vector.broadcast %79 : vector<8x1xf32> to vector<8x32xf32>
      %81 = vector.broadcast %cst_41 : f32 to vector<8x32xf32>
      %82 = arith.select %77, %80, %81 : vector<8x32xi1>, vector<8x32xf32>
      %83 = arith.addf %74, %82 : vector<8x32xf32>
      %c0_42 = arith.constant 0 : index
      %c0_43 = arith.constant 0 : index
      %84 = vector.load %arg7[%c0_42, %c0_43] : memref<8x32xf32, #tpu.memory_space<vmem>>, vector<8x32xf32>
      tpu.vector_store %arg7[%c0_42, %c0_43], %83 {strides = array<i32>} : memref<8x32xf32, #tpu.memory_space<vmem>>, vector<8x32xf32>,
    } else {
    }
    %c0 = arith.constant 0 : index
    %c0_1 = arith.constant 0 : index
    %3 = vector.load %arg7[%c0, %c0_1] : memref<8x32xf32, #tpu.memory_space<vmem>>, vector<8x32xf32>
    %c0_2 = arith.constant 0 : index
    %c0_3 = arith.constant 0 : index
    %4 = vector.load %arg4[%c0_2, %c0_3] : memref<128x32xf32, #tpu.memory_space<vmem>>, vector<128x32xf32>
    %cst = arith.constant dense<0.000000e+00> : vector<8x128xf32>
    %5 = tpu.matmul %3, %4, %cst {dimension_numbers = #tpu.dot_dimension_numbers<[1], [1], [0], [0], [0, 0, 1, 0], [], []>} : vector<8x32xf32>, vector<128x32xf32>, vector<8x128xf32> -> vector<8x128xf32>
    %c0_4 = arith.constant 0 : index
    %c0_5 = arith.constant 0 : index
    %6 = vector.load %arg5[%c0_4, %c0_5] : memref<1x128xf32, #tpu.memory_space<vmem>>, vector<1x128xf32>
    %7 = vector.broadcast %6 : vector<1x128xf32> to vector<8x128xf32>
    %8 = arith.addf %5, %7 : vector<8x128xf32>
    %c0_6 = arith.constant 0 : index
    %c0_7 = arith.constant 0 : index
    %9 = vector.load %arg6[%c0_6, %c0_7] : memref<8x128xf32, #tpu.memory_space<vmem>>, vector<8x128xf32>
    tpu.vector_store %arg6[%c0_6, %c0_7], %8 {strides = array<i32>} : memref<8x128xf32, #tpu.memory_space<vmem>>, vector<8x128xf32>,
    return
  }
  func.func @transform_0(%arg0: i32, %arg1: i32) -> (i32, i32) {
    %c0_i32 = arith.constant 0 : i32
    %c0_i32_0 = arith.constant 0 : i32
    return %arg0, %c0_i32 : i32, i32
  }
  func.func @transform_1(%arg0: i32, %arg1: i32) -> (i32, i32) {
    %c0_i32 = arith.constant 0 : i32
    %c0_i32_0 = arith.constant 0 : i32
    return %arg0, %c0_i32 : i32, i32
  }
  func.func @transform_2(%arg0: i32, %arg1: i32) -> (i32, i32) {
    %c0_i32 = arith.constant 0 : i32
    %c0_i32_0 = arith.constant 0 : i32
    return %arg1, %c0_i32 : i32, i32
  }
  func.func @transform_3(%arg0: i32, %arg1: i32) -> (i32, i32) {
    %c0_i32 = arith.constant 0 : i32
    %c0_i32_0 = arith.constant 0 : i32
    return %c0_i32, %arg1 : i32, i32
  }
  func.func @transform_4(%arg0: i32, %arg1: i32) -> (i32, i32) {
    %c0_i32 = arith.constant 0 : i32
    return %arg0, %arg1 : i32, i32
  }
}

</mosaic_0001>

<llo_original>
// kernel: tpu_custom_call.1
$region0: #{tpu_custom_call.1}
  #allocation0 [shape = 'u32[]', space=smem, size = 0x4, offset = 0x4, fixed_abs, tag = 'smem constant byte address 0x4 - core index']
  #allocation1 [shape = 'u32[144,128]{1,0:T(1,128)}', space=vmem, size = 0x12000, scoped, tag = 'internal scratch']
  #allocation2 [shape = 'f32[8,32]{1,0:T(8,128)}', space=vmem, size = 0x1000, scoped, tag = 'scratch operand']
  %s0 = inlined_call_operand.vmem [shape: s32[8,8], index: 0, kind: input, shape index: {}]
  %s1 = inlined_call_operand.vmem [shape: f32[8,8], index: 1, kind: input, shape index: {}]
  %s2 = inlined_call_operand.vmem [shape: f32[128,32], index: 2, kind: input, shape index: {}]
  %s3 = inlined_call_operand.vmem [shape: f32[1,128], index: 3, kind: input, shape index: {}]
  %s4 = inlined_call_operand.hbm [shape: f32[8,128], index: 4, kind: output, shape index: {}]
  %s5 = sld [smem:[#allocation0]]
  $region30: #{tpu_custom_call.1} parent=0
    _
  %s7 = ssub.s32 1, %s5
  %s8 = scalar_select 0, %s7, %s5
  $region1: #{tpu_custom_call.1} parent=0
    #allocation3 [shape = 'u8[4096]{0}', space=vmem, size = 0x1000, scoped, tag = 'output window, operand 0, single buffered']
    #allocation4 [shape = 's32[1]{0}', space=sflag, size = 0x4, scoped, tag = 'scoped memory for tpu_custom_call.1']
    %9 = vsyncpa [#allocation4], 0
    // Predicated region
    $region2: #{tpu_custom_call.1} parent=1 // pred_check
      _
    $region3: #{tpu_custom_call.1} parent=1 // pred_check_branch
      %11 = sbr.rel (0) target = $region5
    $region4: #{tpu_custom_call.1} parent=1 // pred_region
      _
    $region5: #{tpu_custom_call.1} parent=1 // pred_fallthru
      _
    // Predicated region
    $region6: #{tpu_custom_call.1} parent=1 // pred_check
      _
    $region7: #{tpu_custom_call.1} parent=1 // pred_check_branch
      %13 = sbr.rel (0) target = $region9
    $region8: #{tpu_custom_call.1} parent=1 // pred_region
      _
    $region9: #{tpu_custom_call.1} parent=1 // pred_fallthru
      _
    // Predicated region
    $region10: #{tpu_custom_call.1} parent=1 // pred_check
      _
    $region11: #{tpu_custom_call.1} parent=1 // pred_check_branch
      %15 = sbr.rel (0) target = $region13
    $region12: #{tpu_custom_call.1} parent=1 // pred_region
      _
    $region13: #{tpu_custom_call.1} parent=1 // pred_fallthru
      _
    // Predicated region
    $region14: #{tpu_custom_call.1} parent=1 // pred_check
      _
    $region15: #{tpu_custom_call.1} parent=1 // pred_check_branch
      %17 = sbr.rel (0) target = $region17
    $region16: #{tpu_custom_call.1} parent=1 // pred_region
      _
    $region17: #{tpu_custom_call.1} parent=1 // pred_fallthru
      _
    %p18 = scmp.eq.s32.totalorder 0, 0
    // Predicated region
    $region18: #{tpu_custom_call.1} parent=1 // pred_check
      %p19 = pneg %p18
    $region19: #{tpu_custom_call.1} parent=1 // pred_check_branch
      %21 = sbr.rel (%p19) target = $region21
    $region20: #{tpu_custom_call.1} parent=1 // pred_region
      %v22 = vlaneseq
      %v23 = vand.u32 %v22, 127
      %v24 = vld [vmem:[%s0] sm:$0xff]
      %25 = vset.pattern.permute.xlu0 0
      %26 = vperm.xlu0 %25, %v24
      %v27 = vpop.permute.xlu0 %26
      %vm28 = vcmp.eq.s32.totalorder %v23, %v27
      %v29 = vld [vmem:[%s1] sm:$0xff]
      %31 = vset.pattern.permute.xlu0 0
      %32 = vperm.xlu0 %31, %v29
      %v33 = vpop.permute.xlu0 %32
      %v35 = vsel %vm28, %v33, 0.0
      %v36 = vadd.f32 %v35, 0.0
      %37 = vset.pattern.permute.xlu0 1
      %38 = vperm.xlu0 %37, %v24
      %v39 = vpop.permute.xlu0 %38
      %vm40 = vcmp.eq.s32.totalorder %v23, %v39
      %41 = vset.pattern.permute.xlu0 1
      %42 = vperm.xlu0 %41, %v29
      %v43 = vpop.permute.xlu0 %42
      %v45 = vsel %vm40, %v43, 0.0
      %v46 = vadd.f32 %v36, %v45
      %47 = vset.pattern.permute.xlu0 2
      %48 = vperm.xlu0 %47, %v24
      %v49 = vpop.permute.xlu0 %48
      %vm50 = vcmp.eq.s32.totalorder %v23, %v49
      %51 = vset.pattern.permute.xlu0 2
      %52 = vperm.xlu0 %51, %v29
      %v53 = vpop.permute.xlu0 %52
      %v55 = vsel %vm50, %v53, 0.0
      %v56 = vadd.f32 %v46, %v55
      %57 = vset.pattern.permute.xlu0 3
      %58 = vperm.xlu0 %57, %v24
      %v59 = vpop.permute.xlu0 %58
      %vm60 = vcmp.eq.s32.totalorder %v23, %v59
      %61 = vset.pattern.permute.xlu0 3
      %62 = vperm.xlu0 %61, %v29
      %v63 = vpop.permute.xlu0 %62
      %v65 = vsel %vm60, %v63, 0.0
      %v66 = vadd.f32 %v56, %v65
      %67 = vset.pattern.permute.xlu0 4
      %68 = vperm.xlu0 %67, %v24
      %v69 = vpop.permute.xlu0 %68
      %vm70 = vcmp.eq.s32.totalorder %v23, %v69
      %71 = vset.pattern.permute.xlu0 4
      %72 = vperm.xlu0 %71, %v29
      %v73 = vpop.permute.xlu0 %72
      %v75 = vsel %vm70, %v73, 0.0
      %v76 = vadd.f32 %v66, %v75
      %77 = vset.pattern.permute.xlu0 5
      %78 = vperm.xlu0 %77, %v24
      %v79 = vpop.permute.xlu0 %78
      %vm80 = vcmp.eq.s32.totalorder %v23, %v79
      %81 = vset.pattern.permute.xlu0 5
      %82 = vperm.xlu0 %81, %v29
      %v83 = vpop.permute.xlu0 %82
      %v85 = vsel %vm80, %v83, 0.0
      %v86 = vadd.f32 %v76, %v85
      %87 = vset.pattern.permute.xlu0 6
      %88 = vperm.xlu0 %87, %v24
      %v89 = vpop.permute.xlu0 %88
      %vm90 = vcmp.eq.s32.totalorder %v23, %v89
      %91 = vset.pattern.permute.xlu0 6
      %92 = vperm.xlu0 %91, %v29
      %v93 = vpop.permute.xlu0 %92
      %v95 = vsel %vm90, %v93, 0.0
      %v96 = vadd.f32 %v86, %v95
      %97 = vset.pattern.permute.xlu0 7
      %98 = vperm.xlu0 %97, %v24
      %v99 = vpop.permute.xlu0 %98
      %vm100 = vcmp.eq.s32.totalorder %v23, %v99
      %101 = vset.pattern.permute.xlu0 7
      %102 = vperm.xlu0 %101, %v29
      %v103 = vpop.permute.xlu0 %102
      %v105 = vsel %vm100, %v103, 0.0
      %v106 = vadd.f32 %v96, %v105
      %vm107 = vcmask 261120
      %108 = vst.msk [vmem:[#allocation2] sm:$0xff] %vm107, %v106
    $region21: #{tpu_custom_call.1} parent=1 // pred_fallthru
      _
    %v109 = vld [vmem:[#allocation2] sm:$0xff]
    %v110 = vld [vmem:[%s2] sm:$0xff]
    %v111 = vld [vmem:[%s2 + $0x8] sm:$0xff]
    %v112 = vld [vmem:[%s2 + $0x10] sm:$0xff]
    %v113 = vld [vmem:[%s2 + $0x18] sm:$0xff]
    %v114 = vld [vmem:[%s2 + $0x20] sm:$0xff]
    %v115 = vld [vmem:[%s2 + $0x28] sm:$0xff]
    %v116 = vld [vmem:[%s2 + $0x30] sm:$0xff]
    %v117 = vld [vmem:[%s2 + $0x38] sm:$0xff]
    %v118 = vld [vmem:[%s2 + $0x40] sm:$0xff]
    %v119 = vld [vmem:[%s2 + $0x48] sm:$0xff]
    %v120 = vld [vmem:[%s2 + $0x50] sm:$0xff]
    %v121 = vld [vmem:[%s2 + $0x58] sm:$0xff]
    %v122 = vld [vmem:[%s2 + $0x60] sm:$0xff]
    %v123 = vld [vmem:[%s2 + $0x68] sm:$0xff]
    %v124 = vld [vmem:[%s2 + $0x70] sm:$0xff]
    %v125 = vld [vmem:[%s2 + $0x78] sm:$0xff]
    %v126 = vld [vmem:[%s3] sm:$0x1]
    %v128 = vlaneseq
    %v129 = vshrl.u32 %v128, 7
    %v130 = vsub.s32 0, %v129
    %v131 = vrot.slane %v126, %v130
    %vm133 = vcmask 261120
    %v135 = vsel %vm133, %v109, 0
    %v138 = vsel %vm133, %v110, 0
    %v141 = vsel %vm133, %v111, 0
    %v144 = vsel %vm133, %v112, 0
    %v147 = vsel %vm133, %v113, 0
    %v150 = vsel %vm133, %v114, 0
    %v153 = vsel %vm133, %v115, 0
    %v156 = vsel %vm133, %v116, 0
    %v159 = vsel %vm133, %v117, 0
    %v162 = vsel %vm133, %v118, 0
    %v165 = vsel %vm133, %v119, 0
    %v168 = vsel %vm133, %v120, 0
    %v171 = vsel %vm133, %v121, 0
    %v174 = vsel %vm133, %v122, 0
    %v177 = vsel %vm133, %v123, 0
    %v180 = vsel %vm133, %v124, 0
    %v183 = vsel %vm133, %v125, 0
    %185 = vmatprep.subr.mxu0 0.0
    %186 = vmatpush1.xpose.msra.mxu0 %v138
    %187 = vmatprep.subr.mxu0 0.0
    %188 = vmatpush1.xpose.msra.mxu0 %v141
    %189 = vmatprep.subr.mxu0 0.0
    %190 = vmatpush1.xpose.msra.mxu0 %v144
    %191 = vmatprep.subr.mxu0 0.0
    %192 = vmatpush1.xpose.msra.mxu0 %v147
    %193 = vmatprep.subr.mxu0 0.0
    %194 = vmatpush1.xpose.msra.mxu0 %v150
    %195 = vmatprep.subr.mxu0 0.0
    %196 = vmatpush1.xpose.msra.mxu0 %v153
    %197 = vmatprep.subr.mxu0 0.0
    %198 = vmatpush1.xpose.msra.mxu0 %v156
    %199 = vmatprep.subr.mxu0 0.0
    %200 = vmatpush1.xpose.msra.mxu0 %v159
    %201 = vmatprep.subr.mxu0 0.0
    %202 = vmatpush1.xpose.msra.mxu0 %v162
    %203 = vmatprep.subr.mxu0 0.0
    %204 = vmatpush1.xpose.msra.mxu0 %v165
    %205 = vmatprep.subr.mxu0 0.0
    %206 = vmatpush1.xpose.msra.mxu0 %v168
    %207 = vmatprep.subr.mxu0 0.0
    %208 = vmatpush1.xpose.msra.mxu0 %v171
    %209 = vmatprep.subr.mxu0 0.0
    %210 = vmatpush1.xpose.msra.mxu0 %v174
    %211 = vmatprep.subr.mxu0 0.0
    %212 = vmatpush1.xpose.msra.mxu0 %v177
    %213 = vmatprep.subr.mxu0 0.0
    %214 = vmatpush1.xpose.msra.mxu0 %v180
    %215 = vmatprep.subr.mxu0 0.0
    %216 = vmatpush1.xpose.msra.mxu0 %v183
    %217 = vmatprep.subr.mxu0 0.0
    %218 = vmatpush1.xpose.msra.mxu0 0.0
    %219 = vmatprep.subr.mxu0 0.0
    %220 = vmatpush1.xpose.msra.mxu0 0.0
    %221 = vmatprep.subr.mxu0 0.0
    %222 = vmatpush1.xpose.msra.mxu0 0.0
    %223 = vmatprep.subr.mxu0 0.0
    %224 = vmatpush1.xpose.msra.mxu0 0.0
    %225 = vmatprep.subr.mxu0 0.0
    %226 = vmatpush1.xpose.msra.mxu0 0.0
    %227 = vmatprep.subr.mxu0 0.0
    %228 = vmatpush1.xpose.msra.mxu0 0.0
    %229 = vmatprep.subr.mxu0 0.0
    %230 = vmatpush1.xpose.msra.mxu0 0.0
    %231 = vmatprep.subr.mxu0 0.0
    %232 = vmatpush1.xpose.msra.mxu0 0.0
    %233 = vmatprep.subr.mxu0 0.0
    %234 = vmatpush1.xpose.msra.mxu0 0.0
    %235 = vmatprep.subr.mxu0 0.0
    %236 = vmatpush1.xpose.msra.mxu0 0.0
    %237 = vmatprep.subr.mxu0 0.0
    %238 = vmatpush1.xpose.msra.mxu0 0.0
    %239 = vmatprep.subr.mxu0 0.0
    %240 = vmatpush1.xpose.msra.mxu0 0.0
    %241 = vmatprep.subr.mxu0 0.0
    %242 = vmatpush1.xpose.msra.mxu0 0.0
    %243 = vmatprep.subr.mxu0 0.0
    %244 = vmatpush1.xpose.msra.mxu0 0.0
    %245 = vmatprep.subr.mxu0 0.0
    %246 = vmatpush1.xpose.msra.mxu0 0.0
    %247 = vmatprep.subr.mxu0 0.0
    %248 = vmatpush1.xpose.msra.mxu0 0.0
    %249 = vmatprep.mubr.f32.mxu0 0.0
    %250 = vmatmul.mubr.f32.gmra.mrb[0].mxu0 %v135
    %v251 = vpop.f32.mrb[0].mxu0
    %v252 = vadd.f32 %v131, %v251
    %v253 = vpop.f32.mrb[0].mxu0
    %254 = vdwg.mxu0
    %255 = vst [vmem:[#allocation3] sm:$0xff] %v252
    // Predicated region
    $region22: #{tpu_custom_call.1} parent=1 // pred_check
      _
    $region23: #{tpu_custom_call.1} parent=1 // pred_check_branch
      %257 = sbr.rel (0) target = $region25
    $region24: #{tpu_custom_call.1} parent=1 // pred_region
      %s259 = ssub.s32 128, 128
      %260 = vsyncadd [#allocation4], %s259
      %s262 = sshll.u32 [#allocation3], 4
      %s263 = int_to_ptr.vmem [resolvable:$true] %s262
      %265 = dma.vmem_to_hbm [thread:$0]  %s263, 128, %s4, [#allocation4]
    $region25: #{tpu_custom_call.1} parent=1 // pred_fallthru
      _
    // Predicated region
    $region26: #{tpu_custom_call.1} parent=1 // pred_check
      _
    $region27: #{tpu_custom_call.1} parent=1 // pred_check_branch
      %267 = sbr.rel (0) target = $region29
    $region28: #{tpu_custom_call.1} parent=1 // pred_region
      %268 = dma.done [#allocation4], 128
    $region29: #{tpu_custom_call.1} parent=1 // pred_fallthru
      _
    %269 = vsyncpa [#allocation4], 1

</llo_original>
